<compile_context>
chip_gen: v7x
topology: tpu7x:2x2x1
jax: 0.10.0
libtpu: 0.0.40
codegen_flags: <defaults>
</compile_context>

<pallas_src>
import functools

import jax
import jax.numpy as jnp
from jax import lax
from jax.experimental import pallas as pl
from jax.experimental.pallas import tpu as pltpu

_EPS = 1e-8  # nn.CosineSimilarity default eps


def _round_up(n, m):
    return (n + m - 1) // m * m


def _sublane_multiple(dtype):
    # f32 -> 8, bf16 -> 16, int8/fp8 -> 32 (sublane packing factor).
    return max(8, 32 // jnp.dtype(dtype).itemsize)


def _pick_tile(n, unit, cap):
    """Largest multiple of `unit` that divides round_up(n, unit) and is <= cap."""
    total = _round_up(max(int(n), 1), unit)
    units = total // unit
    cap_units = max(1, int(cap) // unit)
    best = 1
    for d in range(1, cap_units + 1):
        if units % d == 0:
            best = d
    return best * unit


def _similarity_kernel(x_ref, y_ref, inx_ref, iny_ref, o_ref, *, clamp, mm_dtype):
    # x_ref: (tm, H), y_ref: (tn, H), inx_ref: (tm, 1), iny_ref: (1, tn)
    x = x_ref[...]
    y = y_ref[...]
    if mm_dtype is not None:
        x = x.astype(mm_dtype)
        y = y.astype(mm_dtype)

    # Pairwise dot products on the MXU; contract the hidden (lane) dim of both
    # operands directly — no y transpose.
    dots = lax.dot_general(
        x, y,
        dimension_numbers=(((1,), (1,)), ((), ())),
        preferred_element_type=jnp.float32,
    )  # (tm, tn)

    # inv_nx already carries the 1/temp factor; clamp == (1/temp)/eps, so this
    # equals (1 / max(||x||*||y||, eps)) / temp elementwise.
    inv_denom = jnp.minimum(inx_ref[...] * iny_ref[...], clamp)  # (tm, tn)
    o_ref[...] = (dots * inv_denom).astype(o_ref.dtype)


def similarity(x, y, temp, *, tm=512, tn=512, matmul_dtype=None):
    """Pallas equivalent of Similarity(temp).forward(x, y).

    x: (B, 1, H), y: (1, Bq, H)  (the canonical SimCSE broadcast pattern)
    returns: (B, Bq) cosine-similarity matrix divided by temp (float32).
    `temp` must be a static Python scalar.  `matmul_dtype` optionally casts
    only the dot_general operands (e.g. jnp.bfloat16) for MXU throughput.
    """
    assert x.ndim == 3 and y.ndim == 3
    assert x.shape[1] == 1 and y.shape[0] == 1
    assert x.shape[2] == y.shape[2]

    xb = x[:, 0, :]   # (B, H)
    yb = y[0, :, :]   # (Bq, H)
    B, H = xb.shape
    Bq = yb.shape[0]
    itemsize = jnp.dtype(xb.dtype).itemsize
    inv_temp = float(1.0 / temp)   # static scalar; traced temp is unsupported

    # ---- tile selection -----------------------------------------------------
    sub_m = _sublane_multiple(xb.dtype)
    tm = _pick_tile(B, sub_m, max(tm, sub_m))

    # Keep the whole y slab resident (fetched once) when it is small enough.
    bqp_lane = _round_up(Bq, 128)
    cap_n = max(tn, 128)
    if bqp_lane * H * itemsize <= (4 << 20) and 2 * tm * bqp_lane * 4 <= (8 << 20):
        cap_n = max(cap_n, bqp_lane)
    tn = _pick_tile(Bq, 128, cap_n)

    # v7x has 2 TensorCores: avoid a (1,1) grid when a tile can be split.
    if _round_up(B, tm) // tm == 1 and _round_up(Bq, tn) // tn == 1:
        if tm >= 2 * sub_m:
            tm = _round_up((tm + 1) // 2, sub_m)
        elif tn >= 256:
            tn = _round_up((tn + 1) // 2, 128)

    Bp = _round_up(B, tm)
    Bqp = _round_up(Bq, tn)
    grid = (Bp // tm, Bqp // tn)

    # ---- pad (skipped on aligned shapes); padded rows are all-zero ----------
    if Bp != B:
        xb = jnp.pad(xb, ((0, Bp - B), (0, 0)))
    if Bqp != Bq:
        yb = jnp.pad(yb, ((0, Bqp - Bq), (0, 0)))

    # ---- hoisted inverse norms (f32), 1/temp folded into the x-side factor --
    xf = xb.astype(jnp.float32)
    yf = yb.astype(jnp.float32)
    inv_nx = inv_temp / jnp.sqrt(jnp.sum(xf * xf, axis=-1, keepdims=True))   # (Bp, 1)
    inv_ny = (1.0 / jnp.sqrt(jnp.sum(yf * yf, axis=-1, keepdims=True))).T    # (1, Bqp)
    clamp = inv_temp / _EPS   # zero-norm (padded) rows hit this and dot==0 -> 0

    # ---- VMEM budget (double-buffered tiles), capped per generation ---------
    vmem_est = (2 * (tm * H + tn * H) * itemsize      # x / y input slabs
                + 2 * (tm + tn) * 4                   # inv-norm strips
                + 2 * tm * tn * 4)                    # output tile
    try:
        vmem_cap = int(pltpu.get_tpu_info().vmem_capacity_bytes)
    except Exception:
        vmem_cap = 64 << 20
    vmem_limit = int(min(max(int(1.5 * vmem_est) + (1 << 20), 8 << 20),
                         (3 * vmem_cap) // 4))

    # ---- cost estimate reflecting actual re-streaming traffic ---------------
    y_passes = 1 if grid[1] == 1 else grid[0]   # y refetched per i unless resident
    bytes_accessed = (Bp * H * itemsize
                      + y_passes * Bqp * H * itemsize
                      + (Bp + Bqp) * 4
                      + Bp * Bqp * 4)
    cost = pl.CostEstimate(flops=2 * Bp * Bqp * H, transcendentals=0,
                           bytes_accessed=bytes_accessed)

    kernel = functools.partial(_similarity_kernel, clamp=clamp,
                               mm_dtype=matmul_dtype)
    out = pl.pallas_call(
        kernel,
        out_shape=jax.ShapeDtypeStruct((Bp, Bqp), jnp.float32),
        grid=grid,
        in_specs=[
            pl.BlockSpec((tm, H), lambda i, j: (i, 0)),
            pl.BlockSpec((tn, H), lambda i, j: (j, 0)),
            pl.BlockSpec((tm, 1), lambda i, j: (i, 0)),
            pl.BlockSpec((1, tn), lambda i, j: (0, j)),
        ],
        out_specs=pl.BlockSpec((tm, tn), lambda i, j: (i, j)),
        compiler_params=pltpu.CompilerParams(
            dimension_semantics=("parallel", "parallel"),
            vmem_limit_bytes=vmem_limit,
        ),
        cost_estimate=cost,
    )(xb, yb, inv_nx, inv_ny)

    if Bp == B and Bqp == Bq:
        return out
    return out[:B, :Bq]


def _reference(x, y, temp):
    # pure-JAX reference mirroring torch.nn.CosineSimilarity(dim=-1) / temp
    xb, yb = jnp.broadcast_arrays(x, y)
    dot = jnp.sum(xb * yb, axis=-1)
    nx = jnp.sqrt(jnp.sum(xb * xb, axis=-1))
    ny = jnp.sqrt(jnp.sum(yb * yb, axis=-1))
    return dot / jnp.maximum(nx * ny, _EPS) / temp


if __name__ == "__main__":
    key = jax.random.PRNGKey(0)
    kx, ky = jax.random.split(key)
    B, H = 8, 32
    temp = 0.05

    x = jax.random.normal(kx, (B, 1, H), dtype=jnp.float32)
    y = jax.random.normal(ky, (1, B, H), dtype=jnp.float32)

    out = similarity(x, y, temp)
    jax.block_until_ready(out)

    ref = _reference(x, y, temp)
    assert out.shape == (B, B)
    assert jnp.allclose(out, ref, atol=1e-4, rtol=1e-4)
    print("KERNEL_OK")
</pallas_src>

<mosaic_0001>
module attributes {stable_mosaic.version = 11 : i64} {
  func.func @_similarity_kernel(%arg0: i32, %arg1: i32, %arg2: memref<8x32xf32, #tpu.memory_space<vmem>>, %arg3: memref<128x32xf32, #tpu.memory_space<vmem>>, %arg4: memref<8x1xf32, #tpu.memory_space<vmem>>, %arg5: memref<1x128xf32, #tpu.memory_space<vmem>>, %arg6: memref<8x128xf32, #tpu.memory_space<vmem>>) attributes {dimension_semantics = [#tpu.dimension_semantics<parallel>, #tpu.dimension_semantics<parallel>], iteration_bounds = array<i64: 1, 1>, scalar_prefetch = 0 : i64, scratch_operands = 0 : i64, tpu.core_type = #tpu.core_type<tc>, window_params = [{transform_indices = @transform_0, window_bounds = array<i64: 8, 32>}, {transform_indices = @transform_1, window_bounds = array<i64: 128, 32>}, {transform_indices = @transform_2, window_bounds = array<i64: 8, 1>}, {transform_indices = @transform_3, window_bounds = array<i64: 1, 128>}, {transform_indices = @transform_4, window_bounds = array<i64: 8, 128>}]} {
    %c0 = arith.constant 0 : index
    %c0_0 = arith.constant 0 : index
    %0 = vector.load %arg2[%c0, %c0_0] : memref<8x32xf32, #tpu.memory_space<vmem>>, vector<8x32xf32>
    %c0_1 = arith.constant 0 : index
    %c0_2 = arith.constant 0 : index
    %1 = vector.load %arg3[%c0_1, %c0_2] : memref<128x32xf32, #tpu.memory_space<vmem>>, vector<128x32xf32>
    %cst = arith.constant dense<0.000000e+00> : vector<8x128xf32>
    %2 = tpu.matmul %0, %1, %cst {dimension_numbers = #tpu.dot_dimension_numbers<[1], [1], [0], [0], [0, 0, 1, 0], [], []>} : vector<8x32xf32>, vector<128x32xf32>, vector<8x128xf32> -> vector<8x128xf32>
    %c0_3 = arith.constant 0 : index
    %c0_4 = arith.constant 0 : index
    %3 = vector.load %arg4[%c0_3, %c0_4] : memref<8x1xf32, #tpu.memory_space<vmem>>, vector<8x1xf32>
    %c0_5 = arith.constant 0 : index
    %c0_6 = arith.constant 0 : index
    %4 = vector.load %arg5[%c0_5, %c0_6] : memref<1x128xf32, #tpu.memory_space<vmem>>, vector<1x128xf32>
    %5 = vector.broadcast %3 : vector<8x1xf32> to vector<8x128xf32>
    %6 = vector.broadcast %4 : vector<1x128xf32> to vector<8x128xf32>
    %7 = arith.mulf %5, %6 : vector<8x128xf32>
    %cst_7 = arith.constant 2.000000e+09 : f32
    %8 = vector.broadcast %cst_7 : f32 to vector<8x128xf32>
    %9 = arith.minimumf %7, %8 : vector<8x128xf32>
    %10 = arith.mulf %2, %9 : vector<8x128xf32>
    %c0_8 = arith.constant 0 : index
    %c0_9 = arith.constant 0 : index
    %11 = vector.load %arg6[%c0_8, %c0_9] : memref<8x128xf32, #tpu.memory_space<vmem>>, vector<8x128xf32>
    tpu.vector_store %arg6[%c0_8, %c0_9], %10 {strides = array<i32>} : memref<8x128xf32, #tpu.memory_space<vmem>>, vector<8x128xf32>,
    return
  }
  func.func @transform_0(%arg0: i32, %arg1: i32) -> (i32, i32) {
    %c0_i32 = arith.constant 0 : i32
    %c0_i32_0 = arith.constant 0 : i32
    return %arg0, %c0_i32 : i32, i32
  }
  func.func @transform_1(%arg0: i32, %arg1: i32) -> (i32, i32) {
    %c0_i32 = arith.constant 0 : i32
    %c0_i32_0 = arith.constant 0 : i32
    return %arg1, %c0_i32 : i32, i32
  }
  func.func @transform_2(%arg0: i32, %arg1: i32) -> (i32, i32) {
    %c0_i32 = arith.constant 0 : i32
    %c0_i32_0 = arith.constant 0 : i32
    return %arg0, %c0_i32 : i32, i32
  }
  func.func @transform_3(%arg0: i32, %arg1: i32) -> (i32, i32) {
    %c0_i32 = arith.constant 0 : i32
    %c0_i32_0 = arith.constant 0 : i32
    return %c0_i32, %arg1 : i32, i32
  }
  func.func @transform_4(%arg0: i32, %arg1: i32) -> (i32, i32) {
    %c0_i32 = arith.constant 0 : i32
    return %arg0, %arg1 : i32, i32
  }
}

</mosaic_0001>

<llo_original>
// kernel: tpu_custom_call.1
$region0: #{tpu_custom_call.1}
  #allocation0 [shape = 'u32[]', space=smem, size = 0x4, offset = 0x4, fixed_abs, tag = 'smem constant byte address 0x4 - core index']
  #allocation1 [shape = 'u32[144,128]{1,0:T(1,128)}', space=vmem, size = 0x12000, scoped, tag = 'internal scratch']
  %s0 = inlined_call_operand.vmem [shape: f32[8,32], index: 0, kind: input, shape index: {}]
  %s1 = inlined_call_operand.vmem [shape: f32[128,32], index: 1, kind: input, shape index: {}]
  %s2 = inlined_call_operand.vmem [shape: f32[8,1], index: 2, kind: input, shape index: {}]
  %s3 = inlined_call_operand.vmem [shape: f32[1,128], index: 3, kind: input, shape index: {}]
  %s4 = inlined_call_operand.hbm [shape: f32[8,128], index: 4, kind: output, shape index: {}]
  %s5 = sld [smem:[#allocation0]]
  $region26: #{tpu_custom_call.1} parent=0
    _
  %s7 = ssub.s32 1, %s5
  %s8 = scalar_select 0, %s7, %s5
  $region1: #{tpu_custom_call.1} parent=0
    #allocation2 [shape = 'u8[4096]{0}', space=vmem, size = 0x1000, scoped, tag = 'output window, operand 0, single buffered']
    #allocation3 [shape = 's32[1]{0}', space=sflag, size = 0x4, scoped, tag = 'scoped memory for tpu_custom_call.1']
    %9 = vsyncpa [#allocation3], 0
    // Predicated region
    $region2: #{tpu_custom_call.1} parent=1 // pred_check
      _
    $region3: #{tpu_custom_call.1} parent=1 // pred_check_branch
      %11 = sbr.rel (0) target = $region5
    $region4: #{tpu_custom_call.1} parent=1 // pred_region
      _
    $region5: #{tpu_custom_call.1} parent=1 // pred_fallthru
      _
    // Predicated region
    $region6: #{tpu_custom_call.1} parent=1 // pred_check
      _
    $region7: #{tpu_custom_call.1} parent=1 // pred_check_branch
      %13 = sbr.rel (0) target = $region9
    $region8: #{tpu_custom_call.1} parent=1 // pred_region
      _
    $region9: #{tpu_custom_call.1} parent=1 // pred_fallthru
      _
    // Predicated region
    $region10: #{tpu_custom_call.1} parent=1 // pred_check
      _
    $region11: #{tpu_custom_call.1} parent=1 // pred_check_branch
      %15 = sbr.rel (0) target = $region13
    $region12: #{tpu_custom_call.1} parent=1 // pred_region
      _
    $region13: #{tpu_custom_call.1} parent=1 // pred_fallthru
      _
    // Predicated region
    $region14: #{tpu_custom_call.1} parent=1 // pred_check
      _
    $region15: #{tpu_custom_call.1} parent=1 // pred_check_branch
      %17 = sbr.rel (0) target = $region17
    $region16: #{tpu_custom_call.1} parent=1 // pred_region
      _
    $region17: #{tpu_custom_call.1} parent=1 // pred_fallthru
      _
    %v18 = vld [vmem:[%s0] sm:$0xff]
    %v19 = vld [vmem:[%s1] sm:$0xff]
    %v20 = vld [vmem:[%s1 + $0x8] sm:$0xff]
    %v21 = vld [vmem:[%s1 + $0x10] sm:$0xff]
    %v22 = vld [vmem:[%s1 + $0x18] sm:$0xff]
    %v23 = vld [vmem:[%s1 + $0x20] sm:$0xff]
    %v24 = vld [vmem:[%s1 + $0x28] sm:$0xff]
    %v25 = vld [vmem:[%s1 + $0x30] sm:$0xff]
    %v26 = vld [vmem:[%s1 + $0x38] sm:$0xff]
    %v27 = vld [vmem:[%s1 + $0x40] sm:$0xff]
    %v28 = vld [vmem:[%s1 + $0x48] sm:$0xff]
    %v29 = vld [vmem:[%s1 + $0x50] sm:$0xff]
    %v30 = vld [vmem:[%s1 + $0x58] sm:$0xff]
    %v31 = vld [vmem:[%s1 + $0x60] sm:$0xff]
    %v32 = vld [vmem:[%s1 + $0x68] sm:$0xff]
    %v33 = vld [vmem:[%s1 + $0x70] sm:$0xff]
    %v34 = vld [vmem:[%s1 + $0x78] sm:$0xff]
    %vm35 = vcmask 261120
    %v37 = vsel %vm35, %v18, 0
    %v40 = vsel %vm35, %v19, 0
    %v43 = vsel %vm35, %v20, 0
    %v46 = vsel %vm35, %v21, 0
    %v49 = vsel %vm35, %v22, 0
    %v52 = vsel %vm35, %v23, 0
    %v55 = vsel %vm35, %v24, 0
    %v58 = vsel %vm35, %v25, 0
    %v61 = vsel %vm35, %v26, 0
    %v64 = vsel %vm35, %v27, 0
    %v67 = vsel %vm35, %v28, 0
    %v70 = vsel %vm35, %v29, 0
    %v73 = vsel %vm35, %v30, 0
    %v76 = vsel %vm35, %v31, 0
    %v79 = vsel %vm35, %v32, 0
    %v82 = vsel %vm35, %v33, 0
    %v85 = vsel %vm35, %v34, 0
    %87 = vmatprep.subr.mxu0 0.0
    %88 = vmatpush1.xpose.msra.mxu0 %v40
    %89 = vmatprep.subr.mxu0 0.0
    %90 = vmatpush1.xpose.msra.mxu0 %v43
    %91 = vmatprep.subr.mxu0 0.0
    %92 = vmatpush1.xpose.msra.mxu0 %v46
    %93 = vmatprep.subr.mxu0 0.0
    %94 = vmatpush1.xpose.msra.mxu0 %v49
    %95 = vmatprep.subr.mxu0 0.0
    %96 = vmatpush1.xpose.msra.mxu0 %v52
    %97 = vmatprep.subr.mxu0 0.0
    %98 = vmatpush1.xpose.msra.mxu0 %v55
    %99 = vmatprep.subr.mxu0 0.0
    %100 = vmatpush1.xpose.msra.mxu0 %v58
    %101 = vmatprep.subr.mxu0 0.0
    %102 = vmatpush1.xpose.msra.mxu0 %v61
    %103 = vmatprep.subr.mxu0 0.0
    %104 = vmatpush1.xpose.msra.mxu0 %v64
    %105 = vmatprep.subr.mxu0 0.0
    %106 = vmatpush1.xpose.msra.mxu0 %v67
    %107 = vmatprep.subr.mxu0 0.0
    %108 = vmatpush1.xpose.msra.mxu0 %v70
    %109 = vmatprep.subr.mxu0 0.0
    %110 = vmatpush1.xpose.msra.mxu0 %v73
    %111 = vmatprep.subr.mxu0 0.0
    %112 = vmatpush1.xpose.msra.mxu0 %v76
    %113 = vmatprep.subr.mxu0 0.0
    %114 = vmatpush1.xpose.msra.mxu0 %v79
    %115 = vmatprep.subr.mxu0 0.0
    %116 = vmatpush1.xpose.msra.mxu0 %v82
    %117 = vmatprep.subr.mxu0 0.0
    %118 = vmatpush1.xpose.msra.mxu0 %v85
    %119 = vmatprep.subr.mxu0 0.0
    %120 = vmatpush1.xpose.msra.mxu0 0.0
    %121 = vmatprep.subr.mxu0 0.0
    %122 = vmatpush1.xpose.msra.mxu0 0.0
    %123 = vmatprep.subr.mxu0 0.0
    %124 = vmatpush1.xpose.msra.mxu0 0.0
    %125 = vmatprep.subr.mxu0 0.0
    %126 = vmatpush1.xpose.msra.mxu0 0.0
    %127 = vmatprep.subr.mxu0 0.0
    %128 = vmatpush1.xpose.msra.mxu0 0.0
    %129 = vmatprep.subr.mxu0 0.0
    %130 = vmatpush1.xpose.msra.mxu0 0.0
    %131 = vmatprep.subr.mxu0 0.0
    %132 = vmatpush1.xpose.msra.mxu0 0.0
    %133 = vmatprep.subr.mxu0 0.0
    %134 = vmatpush1.xpose.msra.mxu0 0.0
    %135 = vmatprep.subr.mxu0 0.0
    %136 = vmatpush1.xpose.msra.mxu0 0.0
    %137 = vmatprep.subr.mxu0 0.0
    %138 = vmatpush1.xpose.msra.mxu0 0.0
    %139 = vmatprep.subr.mxu0 0.0
    %140 = vmatpush1.xpose.msra.mxu0 0.0
    %141 = vmatprep.subr.mxu0 0.0
    %142 = vmatpush1.xpose.msra.mxu0 0.0
    %143 = vmatprep.subr.mxu0 0.0
    %144 = vmatpush1.xpose.msra.mxu0 0.0
    %145 = vmatprep.subr.mxu0 0.0
    %146 = vmatpush1.xpose.msra.mxu0 0.0
    %147 = vmatprep.subr.mxu0 0.0
    %148 = vmatpush1.xpose.msra.mxu0 0.0
    %149 = vmatprep.subr.mxu0 0.0
    %150 = vmatpush1.xpose.msra.mxu0 0.0
    %151 = vmatprep.mubr.f32.mxu0 0.0
    %152 = vmatmul.mubr.f32.gmra.mrb[0].mxu0 %v37
    %v153 = vpop.f32.mrb[0].mxu0
    %v154 = vadd.f32 0.0, %v153
    %v155 = vpop.f32.mrb[0].mxu0
    %156 = vdwg.mxu0
    %v157 = vld [vmem:[%s2] sm:$0xff]
    %v158 = vld [vmem:[%s3] sm:$0x1]
    %160 = vset.pattern.permute.xlu0 0
    %161 = vperm.xlu0 %160, %v157
    %v162 = vpop.permute.xlu0 %161
    %v165 = vlaneseq
    %v166 = vshrl.u32 %v165, 7
    %v167 = vsub.s32 0, %v166
    %v168 = vrot.slane %v158, %v167
    %v170 = vmul.f32 %v162, %v168
    %v171 = vmin.f32 %v170, 2e+09
    %v172 = vmul.f32 %v154, %v171
    %173 = vst [vmem:[#allocation2] sm:$0xff] %v172
    // Predicated region
    $region18: #{tpu_custom_call.1} parent=1 // pred_check
      _
    $region19: #{tpu_custom_call.1} parent=1 // pred_check_branch
      %175 = sbr.rel (0) target = $region21
    $region20: #{tpu_custom_call.1} parent=1 // pred_region
      %s177 = ssub.s32 128, 128
      %178 = vsyncadd [#allocation3], %s177
      %s180 = sshll.u32 [#allocation2], 4
      %s181 = int_to_ptr.vmem [resolvable:$true] %s180
      %183 = dma.vmem_to_hbm [thread:$0]  %s181, 128, %s4, [#allocation3]
    $region21: #{tpu_custom_call.1} parent=1 // pred_fallthru
      _
    // Predicated region
    $region22: #{tpu_custom_call.1} parent=1 // pred_check
      _
    $region23: #{tpu_custom_call.1} parent=1 // pred_check_branch
      %185 = sbr.rel (0) target = $region25
    $region24: #{tpu_custom_call.1} parent=1 // pred_region
      %186 = dma.done [#allocation3], 128
    $region25: #{tpu_custom_call.1} parent=1 // pred_fallthru
      _
    %187 = vsyncpa [#allocation3], 1

</llo_original>
